<compile_context>
chip_gen: v5e
topology: v5e:2x2
jax: 0.10.0
libtpu: 0.0.40
codegen_flags: <defaults>
</compile_context>

<pallas_src>
import jax
import jax.numpy as jnp
from jax.experimental import pallas as pl
from jax.experimental.pallas import tpu as pltpu


def _round_up(x, m):
    return ((x + m - 1) // m) * m


def _is_v5e():
    try:
        kind = jax.devices()[0].device_kind.lower()
    except Exception:
        return False
    return ("v5 lite" in kind) or ("v5e" in kind) or ("v5litepod" in kind)


def _make_kernel(Ep, Tp, Vp, O, use_concat):
    f32 = jnp.float32
    bf16 = jnp.bfloat16

    def kernel(act_ref,                              # (TM, Ep+Tp+Vp) bf16
               w_emb_ref, w_txt_ref, w_vis_ref,      # (Ep/Tp/Vp, O)  bf16
               w_att1_ref,                           # (3O, O)        bf16
               w_att2_ref,                           # (O, 3)         bf16
               w_fuse_ref,                           # (O, O)         bf16
               rowp_ref,                             # (8, O) f32 packed row params
               out_ref):                             # (TM, O)
        b_emb = rowp_ref[0:1, :]
        b_txt = rowp_ref[1:2, :]
        b_vis = rowp_ref[2:3, :]
        b_att1 = rowp_ref[3:4, :]
        b_fuse = rowp_ref[4:5, :]
        ln_g = rowp_ref[5:6, :]
        ln_b = rowp_ref[6:7, :]
        b_att2 = rowp_ref[7:8, 0:3]

        # Static slices of the packed activation tile (128-lane boundaries -> free).
        emb_x = act_ref[:, 0:Ep]
        txt_x = act_ref[:, Ep:Ep + Tp]
        vis_x = act_ref[:, Ep + Tp:Ep + Tp + Vp]

        # Per-modality projections: bf16 MXU matmuls, f32 accumulation, bias add,
        # then a single cast to bf16 so only half-width copies stay live across
        # the attention matmuls (halves vreg pressure at TM>=256).
        emb_p = (jnp.dot(emb_x, w_emb_ref[...], preferred_element_type=f32) + b_emb).astype(bf16)
        txt_p = (jnp.dot(txt_x, w_txt_ref[...], preferred_element_type=f32) + b_txt).astype(bf16)
        vis_p = (jnp.dot(vis_x, w_vis_ref[...], preferred_element_type=f32) + b_vis).astype(bf16)

        # Modal attention MLP.
        if use_concat:
            # v6e/v7x: one (TM, 3O) @ (3O, O) matmul fills the 256-wide MXU.
            concat = jnp.concatenate([emb_p, txt_p, vis_p], axis=-1)
            h = jnp.dot(concat, w_att1_ref[...], preferred_element_type=f32)
        else:
            # v5e: 128-wide MXU -> no fill advantage from K=3O; skip the lane
            # concat and accumulate three K=O matmuls instead.
            h = (jnp.dot(emb_p, w_att1_ref[0:O, :], preferred_element_type=f32)
                 + jnp.dot(txt_p, w_att1_ref[O:2 * O, :], preferred_element_type=f32)
                 + jnp.dot(vis_p, w_att1_ref[2 * O:3 * O, :], preferred_element_type=f32))
        h = jnp.maximum(h + b_att1, 0.0)                               # ReLU

        # Logits (TM, 3): bf16 x bf16 single-pass MXU.
        logits = jnp.dot(h.astype(bf16), w_att2_ref[...], preferred_element_type=f32) + b_att2

        # Elementwise 3-way softmax on sliced columns (no cross-lane reductions).
        l0 = logits[:, 0:1]
        l1 = logits[:, 1:2]
        l2 = logits[:, 2:3]
        m = jnp.maximum(jnp.maximum(l0, l1), l2)
        e0 = jnp.exp(l0 - m)
        e1 = jnp.exp(l1 - m)
        e2 = jnp.exp(l2 - m)
        inv = pl.reciprocal(e0 + e1 + e2, approx=True)                 # EUP slot, ~free

        # Softmax-weighted combination: f32 weights x bf16 projections -> f32.
        fused = (e0 * inv) * emb_p + (e1 * inv) * txt_p + (e2 * inv) * vis_p

        # Fusion layer: Linear -> LayerNorm -> ReLU -> Dropout (eval = identity).
        fused = jnp.dot(fused.astype(bf16), w_fuse_ref[...], preferred_element_type=f32) + b_fuse
        mean = jnp.mean(fused, axis=-1, keepdims=True)
        cent = fused - mean
        var = jnp.mean(cent * cent, axis=-1, keepdims=True)
        fused = cent * jax.lax.rsqrt(var + 1e-5)
        fused = fused * ln_g + ln_b
        fused = jnp.maximum(fused, 0.0)
        # TODO(synk): nn.Dropout(0.1) is identity in eval mode; train-mode dropout not implemented.

        out_ref[...] = fused.astype(out_ref.dtype)

    return kernel


def init_params(key, E, T, V, O):
    """PyTorch-style Linear init (f32). Weights stored (in_features, out_features)."""
    def linear(k, fan_in, fan_out):
        k1, k2 = jax.random.split(k)
        bound = 1.0 / float(fan_in) ** 0.5
        w = jax.random.uniform(k1, (fan_in, fan_out), jnp.float32, -bound, bound)
        b = jax.random.uniform(k2, (1, fan_out), jnp.float32, -bound, bound)
        return w, b

    keys = jax.random.split(key, 6)
    w_emb, b_emb = linear(keys[0], E, O)
    w_txt, b_txt = linear(keys[1], T, O)
    w_vis, b_vis = linear(keys[2], V, O)
    w_att1, b_att1 = linear(keys[3], 3 * O, O)
    w_att2, b_att2 = linear(keys[4], O, 3)
    w_fuse, b_fuse = linear(keys[5], O, O)
    return dict(
        w_emb=w_emb, b_emb=b_emb,
        w_txt=w_txt, b_txt=b_txt,
        w_vis=w_vis, b_vis=b_vis,
        w_att1=w_att1, b_att1=b_att1,
        w_att2=w_att2, b_att2=b_att2,
        w_fuse=w_fuse, b_fuse=b_fuse,
        ln_g=jnp.ones((1, O), jnp.float32), ln_b=jnp.zeros((1, O), jnp.float32),
    )


def multimodal_fusion(emb, txt, vis, p, *, block_rows=512, out_dtype=jnp.float32,
                      use_concat=None):
    # NOTE: for very small batches (B <~ 64) this layer is inherently
    # launch/weight-DMA bound -- batch multiple calls together if it is hot.
    B, E = emb.shape
    T = txt.shape[1]
    V = vis.shape[1]
    O = p["w_fuse"].shape[1]
    assert O >= 3

    bf16 = jnp.bfloat16
    if use_concat is None:
        use_concat = not _is_v5e()   # concat matmul only pays off on 256-wide MXUs

    # --- batch tiling --------------------------------------------------------
    B16 = _round_up(B, 16)                               # bf16 sublane packing
    TM = min(_round_up(block_rows, 16), B16)
    # v7x has two TensorCores: make sure the "parallel" grid axis has >=2 steps
    # whenever the batch allows it (no cost on single-TC v5e/v6e).
    if B16 // TM < 2 and B16 >= 32:
        TM = _round_up((B16 + 1) // 2, 16)
    Bp = _round_up(B, TM)

    # --- activations: pad each modality to a 128-lane multiple and pack into a
    # single bf16 array -> one lane-aligned DMA per grid step.
    Ep = _round_up(E, 128)
    Tp = _round_up(T, 128)
    Vp = _round_up(V, 128)
    Dall = Ep + Tp + Vp

    def prep_act(x, Dp):
        return jnp.pad(x.astype(bf16), ((0, Bp - B), (0, Dp - x.shape[1])))

    acts = jnp.concatenate([prep_act(emb, Ep), prep_act(txt, Tp), prep_act(vis, Vp)], axis=-1)

    def pad_w(w, Dp):
        return jnp.pad(w.astype(bf16), ((0, Dp - w.shape[0]), (0, 0)))

    # Pack all row parameters into a single (8, O) f32 tile (one DMA).
    rowp = jnp.concatenate(
        [p["b_emb"], p["b_txt"], p["b_vis"], p["b_att1"], p["b_fuse"],
         p["ln_g"], p["ln_b"],
         jnp.pad(p["b_att2"], ((0, 0), (0, O - 3)))],
        axis=0).astype(jnp.float32)

    args = [
        acts,
        pad_w(p["w_emb"], Ep), pad_w(p["w_txt"], Tp), pad_w(p["w_vis"], Vp),
        p["w_att1"].astype(bf16),
        p["w_att2"].astype(bf16),
        p["w_fuse"].astype(bf16),
        rowp,
    ]

    # Constant index_map -> block is DMA'd once and stays VMEM-resident.
    def resident(shape):
        return pl.BlockSpec(shape, lambda i: (0, 0))

    flops = 2 * Bp * O * (Ep + Tp + Vp + 3 * O + 3 + O)
    bytes_accessed = int(
        2 * Bp * Dall                                    # bf16 activations in
        + 2 * (Ep + Tp + Vp + 3 * O + O) * O             # bf16 weights
        + 2 * O * 3 + 4 * 8 * O                          # bf16 w_att2 + packed rows
        + jnp.dtype(out_dtype).itemsize * Bp * O)        # output

    kernel = _make_kernel(Ep, Tp, Vp, O, use_concat)

    out = pl.pallas_call(
        kernel,
        grid=(Bp // TM,),
        in_specs=[
            pl.BlockSpec((TM, Dall), lambda i: (i, 0)),
            resident((Ep, O)), resident((Tp, O)), resident((Vp, O)),
            resident((3 * O, O)),
            resident((O, 3)),
            resident((O, O)),
            resident((8, O)),
        ],
        out_specs=pl.BlockSpec((TM, O), lambda i: (i, 0)),
        out_shape=jax.ShapeDtypeStruct((Bp, O), out_dtype),
        compiler_params=pltpu.CompilerParams(
            dimension_semantics=("parallel",),
            vmem_limit_bytes=32 * 1024 * 1024),
        cost_estimate=pl.CostEstimate(
            flops=flops, transcendentals=5 * Bp, bytes_accessed=bytes_accessed),
    )(*args)
    return out[:B]


def reference(emb, txt, vis, p):
    """Pure-JAX reference of the PyTorch forward (eval mode), using the same
    bf16-quantized weights the kernel consumes, with f32 math."""
    def q(w):
        return w.astype(jnp.bfloat16).astype(jnp.float32)

    emb_proj = emb @ q(p["w_emb"]) + p["b_emb"]
    txt_proj = txt @ q(p["w_txt"]) + p["b_txt"]
    vis_proj = vis @ q(p["w_vis"]) + p["b_vis"]
    concat = jnp.concatenate([emb_proj, txt_proj, vis_proj], axis=-1)
    h = jnp.maximum(concat @ q(p["w_att1"]) + p["b_att1"], 0.0)
    logits = h @ q(p["w_att2"]) + p["b_att2"]
    w = jax.nn.softmax(logits, axis=-1)
    fused = w[:, 0:1] * emb_proj + w[:, 1:2] * txt_proj + w[:, 2:3] * vis_proj
    fused = fused @ q(p["w_fuse"]) + p["b_fuse"]
    mean = jnp.mean(fused, axis=-1, keepdims=True)
    var = jnp.mean((fused - mean) ** 2, axis=-1, keepdims=True)
    fused = (fused - mean) * jax.lax.rsqrt(var + 1e-5)
    fused = fused * p["ln_g"] + p["ln_b"]
    return jnp.maximum(fused, 0.0)


if __name__ == "__main__":
    B, E, T, V, O = 2, 64, 384, 256, 128  # batch, embedding_dim, text_dim, vision_dim, output_dim

    key = jax.random.PRNGKey(0)
    k_emb, k_txt, k_vis, k_par, k_big = jax.random.split(key, 5)
    embedding_feat = jax.random.normal(k_emb, (B, E), jnp.float32)
    text_feat = jax.random.normal(k_txt, (B, T), jnp.float32)
    vision_feat = jax.random.normal(k_vis, (B, V), jnp.float32)
    params = init_params(k_par, E, T, V, O)

    out = multimodal_fusion(embedding_feat, text_feat, vision_feat, params)
    out = jax.block_until_ready(out)
    ref = reference(embedding_feat, text_feat, vision_feat, params)
    assert out.shape == (B, O)
    max_diff = float(jnp.max(jnp.abs(out - ref)))
    assert jnp.allclose(out, ref, rtol=5e-2, atol=5e-2), (
        "mismatch vs JAX reference (B=2); max abs diff = %g" % max_diff)

    # Also exercise the multi-tile (>=2 grid steps) path.
    B2 = 100
    ks = jax.random.split(k_big, 3)
    emb2 = jax.random.normal(ks[0], (B2, E), jnp.float32)
    txt2 = jax.random.normal(ks[1], (B2, T), jnp.float32)
    vis2 = jax.random.normal(ks[2], (B2, V), jnp.float32)
    out2 = jax.block_until_ready(multimodal_fusion(emb2, txt2, vis2, params))
    ref2 = reference(emb2, txt2, vis2, params)
    assert out2.shape == (B2, O)
    max_diff2 = float(jnp.max(jnp.abs(out2 - ref2)))
    assert jnp.allclose(out2, ref2, rtol=5e-2, atol=5e-2), (
        "mismatch vs JAX reference (B=100); max abs diff = %g" % max_diff2)

    print("KERNEL_OK")
</pallas_src>

<mosaic_0001>
module attributes {stable_mosaic.version = 11 : i64} {
  func.func @kernel(%arg0: i32, %arg1: memref<16x768xbf16, #tpu.memory_space<vmem>>, %arg2: memref<128x128xbf16, #tpu.memory_space<vmem>>, %arg3: memref<384x128xbf16, #tpu.memory_space<vmem>>, %arg4: memref<256x128xbf16, #tpu.memory_space<vmem>>, %arg5: memref<384x128xbf16, #tpu.memory_space<vmem>>, %arg6: memref<128x3xbf16, #tpu.memory_space<vmem>>, %arg7: memref<128x128xbf16, #tpu.memory_space<vmem>>, %arg8: memref<8x128xf32, #tpu.memory_space<vmem>>, %arg9: memref<16x128xf32, #tpu.memory_space<vmem>>) attributes {dimension_semantics = [#tpu.dimension_semantics<parallel>], iteration_bounds = array<i64: 1>, scalar_prefetch = 0 : i64, scratch_operands = 0 : i64, tpu.core_type = #tpu.core_type<tc>, window_params = [{transform_indices = @transform_0, window_bounds = array<i64: 16, 768>}, {pipeline_mode = #tpu.pipeline_mode<synchronous>, transform_indices = @transform_1, window_bounds = array<i64: 128, 128>}, {pipeline_mode = #tpu.pipeline_mode<synchronous>, transform_indices = @transform_2, window_bounds = array<i64: 384, 128>}, {pipeline_mode = #tpu.pipeline_mode<synchronous>, transform_indices = @transform_3, window_bounds = array<i64: 256, 128>}, {pipeline_mode = #tpu.pipeline_mode<synchronous>, transform_indices = @transform_4, window_bounds = array<i64: 384, 128>}, {pipeline_mode = #tpu.pipeline_mode<synchronous>, transform_indices = @transform_5, window_bounds = array<i64: 128, 3>}, {pipeline_mode = #tpu.pipeline_mode<synchronous>, transform_indices = @transform_6, window_bounds = array<i64: 128, 128>}, {pipeline_mode = #tpu.pipeline_mode<synchronous>, transform_indices = @transform_7, window_bounds = array<i64: 8, 128>}, {transform_indices = @transform_8, window_bounds = array<i64: 16, 128>}]} {
    %c0 = arith.constant 0 : index
    %c0_0 = arith.constant 0 : index
    %0 = vector.load %arg8[%c0, %c0_0] : memref<8x128xf32, #tpu.memory_space<vmem>>, vector<1x128xf32>
    %c1 = arith.constant 1 : index
    %c0_1 = arith.constant 0 : index
    %1 = vector.load %arg8[%c1, %c0_1] : memref<8x128xf32, #tpu.memory_space<vmem>>, vector<1x128xf32>
    %c2 = arith.constant 2 : index
    %c0_2 = arith.constant 0 : index
    %2 = vector.load %arg8[%c2, %c0_2] : memref<8x128xf32, #tpu.memory_space<vmem>>, vector<1x128xf32>
    %c3 = arith.constant 3 : index
    %c0_3 = arith.constant 0 : index
    %3 = vector.load %arg8[%c3, %c0_3] : memref<8x128xf32, #tpu.memory_space<vmem>>, vector<1x128xf32>
    %c4 = arith.constant 4 : index
    %c0_4 = arith.constant 0 : index
    %4 = vector.load %arg8[%c4, %c0_4] : memref<8x128xf32, #tpu.memory_space<vmem>>, vector<1x128xf32>
    %c5 = arith.constant 5 : index
    %c0_5 = arith.constant 0 : index
    %5 = vector.load %arg8[%c5, %c0_5] : memref<8x128xf32, #tpu.memory_space<vmem>>, vector<1x128xf32>
    %c6 = arith.constant 6 : index
    %c0_6 = arith.constant 0 : index
    %6 = vector.load %arg8[%c6, %c0_6] : memref<8x128xf32, #tpu.memory_space<vmem>>, vector<1x128xf32>
    %c7 = arith.constant 7 : index
    %c0_7 = arith.constant 0 : index
    %7 = vector.load %arg8[%c7, %c0_7] : memref<8x128xf32, #tpu.memory_space<vmem>>, vector<1x3xf32>
    %c0_8 = arith.constant 0 : index
    %c0_9 = arith.constant 0 : index
    %8 = vector.load %arg1[%c0_8, %c0_9] : memref<16x768xbf16, #tpu.memory_space<vmem>>, vector<16x128xbf16>
    %c0_10 = arith.constant 0 : index
    %c128 = arith.constant 128 : index
    %9 = vector.load %arg1[%c0_10, %c128] : memref<16x768xbf16, #tpu.memory_space<vmem>>, vector<16x384xbf16>
    %c0_11 = arith.constant 0 : index
    %c512 = arith.constant 512 : index
    %10 = vector.load %arg1[%c0_11, %c512] : memref<16x768xbf16, #tpu.memory_space<vmem>>, vector<16x256xbf16>
    %c0_12 = arith.constant 0 : index
    %c0_13 = arith.constant 0 : index
    %11 = vector.load %arg2[%c0_12, %c0_13] : memref<128x128xbf16, #tpu.memory_space<vmem>>, vector<128x128xbf16>
    %cst = arith.constant dense<0.000000e+00> : vector<16x128xf32>
    %12 = tpu.matmul %8, %11, %cst {dimension_numbers = #tpu.dot_dimension_numbers<[1], [0], [0], [1], [0, 0, 1, 1], [], []>} : vector<16x128xbf16>, vector<128x128xbf16>, vector<16x128xf32> -> vector<16x128xf32>
    %13 = vector.broadcast %0 : vector<1x128xf32> to vector<16x128xf32>
    %14 = arith.addf %12, %13 : vector<16x128xf32>
    %15 = arith.truncf %14 : vector<16x128xf32> to vector<16x128xbf16>
    %c0_14 = arith.constant 0 : index
    %c0_15 = arith.constant 0 : index
    %16 = vector.load %arg3[%c0_14, %c0_15] : memref<384x128xbf16, #tpu.memory_space<vmem>>, vector<384x128xbf16>
    %cst_16 = arith.constant dense<0.000000e+00> : vector<16x128xf32>
    %17 = tpu.matmul %9, %16, %cst_16 {dimension_numbers = #tpu.dot_dimension_numbers<[1], [0], [0], [1], [0, 0, 1, 1], [], []>} : vector<16x384xbf16>, vector<384x128xbf16>, vector<16x128xf32> -> vector<16x128xf32>
    %18 = vector.broadcast %1 : vector<1x128xf32> to vector<16x128xf32>
    %19 = arith.addf %17, %18 : vector<16x128xf32>
    %20 = arith.truncf %19 : vector<16x128xf32> to vector<16x128xbf16>
    %c0_17 = arith.constant 0 : index
    %c0_18 = arith.constant 0 : index
    %21 = vector.load %arg4[%c0_17, %c0_18] : memref<256x128xbf16, #tpu.memory_space<vmem>>, vector<256x128xbf16>
    %cst_19 = arith.constant dense<0.000000e+00> : vector<16x128xf32>
    %22 = tpu.matmul %10, %21, %cst_19 {dimension_numbers = #tpu.dot_dimension_numbers<[1], [0], [0], [1], [0, 0, 1, 1], [], []>} : vector<16x256xbf16>, vector<256x128xbf16>, vector<16x128xf32> -> vector<16x128xf32>
    %23 = vector.broadcast %2 : vector<1x128xf32> to vector<16x128xf32>
    %24 = arith.addf %22, %23 : vector<16x128xf32>
    %25 = arith.truncf %24 : vector<16x128xf32> to vector<16x128xbf16>
    %26 = tpu.concatenate %15, %20, %25 in 1 : vector<16x128xbf16>, vector<16x128xbf16>, vector<16x128xbf16> -> vector<16x384xbf16>
    %c0_20 = arith.constant 0 : index
    %c0_21 = arith.constant 0 : index
    %27 = vector.load %arg5[%c0_20, %c0_21] : memref<384x128xbf16, #tpu.memory_space<vmem>>, vector<384x128xbf16>
    %cst_22 = arith.constant dense<0.000000e+00> : vector<16x128xf32>
    %28 = tpu.matmul %26, %27, %cst_22 {dimension_numbers = #tpu.dot_dimension_numbers<[1], [0], [0], [1], [0, 0, 1, 1], [], []>} : vector<16x384xbf16>, vector<384x128xbf16>, vector<16x128xf32> -> vector<16x128xf32>
    %29 = vector.broadcast %3 : vector<1x128xf32> to vector<16x128xf32>
    %30 = arith.addf %28, %29 : vector<16x128xf32>
    %cst_23 = arith.constant 0.000000e+00 : f32
    %31 = vector.broadcast %cst_23 : f32 to vector<16x128xf32>
    %32 = arith.maximumf %30, %31 : vector<16x128xf32>
    %33 = arith.truncf %32 : vector<16x128xf32> to vector<16x128xbf16>
    %c0_24 = arith.constant 0 : index
    %c0_25 = arith.constant 0 : index
    %34 = vector.load %arg6[%c0_24, %c0_25] : memref<128x3xbf16, #tpu.memory_space<vmem>>, vector<128x3xbf16>
    %cst_26 = arith.constant dense<0.000000e+00> : vector<16x3xf32>
    %35 = tpu.matmul %33, %34, %cst_26 {dimension_numbers = #tpu.dot_dimension_numbers<[1], [0], [0], [1], [0, 0, 1, 1], [], []>} : vector<16x128xbf16>, vector<128x3xbf16>, vector<16x3xf32> -> vector<16x3xf32>
    %36 = vector.broadcast %7 : vector<1x3xf32> to vector<16x3xf32>
    %37 = arith.addf %35, %36 : vector<16x3xf32>
    %38 = vector.extract_strided_slice %37 {offsets = [0, 0], sizes = [16, 1], strides = [1, 1]} : vector<16x3xf32> to vector<16x1xf32>
    %39 = vector.extract_strided_slice %37 {offsets = [0, 1], sizes = [16, 1], strides = [1, 1]} : vector<16x3xf32> to vector<16x1xf32>
    %40 = vector.extract_strided_slice %37 {offsets = [0, 2], sizes = [16, 1], strides = [1, 1]} : vector<16x3xf32> to vector<16x1xf32>
    %41 = arith.maximumf %38, %39 : vector<16x1xf32>
    %42 = arith.maximumf %41, %40 : vector<16x1xf32>
    %43 = arith.subf %38, %42 : vector<16x1xf32>
    %44 = math.exp %43 : vector<16x1xf32>
    %45 = arith.subf %39, %42 : vector<16x1xf32>
    %46 = math.exp %45 : vector<16x1xf32>
    %47 = arith.subf %40, %42 : vector<16x1xf32>
    %48 = math.exp %47 : vector<16x1xf32>
    %49 = arith.addf %44, %46 : vector<16x1xf32>
    %50 = arith.addf %49, %48 : vector<16x1xf32>
    %51 = tpu.reciprocal %50 {approx = true} : vector<16x1xf32> -> vector<16x1xf32>
    %52 = arith.mulf %44, %51 : vector<16x1xf32>
    %53 = arith.extf %15 : vector<16x128xbf16> to vector<16x128xf32>
    %54 = vector.broadcast %52 : vector<16x1xf32> to vector<16x128xf32>
    %55 = arith.mulf %54, %53 : vector<16x128xf32>
    %56 = arith.mulf %46, %51 : vector<16x1xf32>
    %57 = arith.extf %20 : vector<16x128xbf16> to vector<16x128xf32>
    %58 = vector.broadcast %56 : vector<16x1xf32> to vector<16x128xf32>
    %59 = arith.mulf %58, %57 : vector<16x128xf32>
    %60 = arith.addf %55, %59 : vector<16x128xf32>
    %61 = arith.mulf %48, %51 : vector<16x1xf32>
    %62 = arith.extf %25 : vector<16x128xbf16> to vector<16x128xf32>
    %63 = vector.broadcast %61 : vector<16x1xf32> to vector<16x128xf32>
    %64 = arith.mulf %63, %62 : vector<16x128xf32>
    %65 = arith.addf %60, %64 : vector<16x128xf32>
    %66 = arith.truncf %65 : vector<16x128xf32> to vector<16x128xbf16>
    %c0_27 = arith.constant 0 : index
    %c0_28 = arith.constant 0 : index
    %67 = vector.load %arg7[%c0_27, %c0_28] : memref<128x128xbf16, #tpu.memory_space<vmem>>, vector<128x128xbf16>
    %cst_29 = arith.constant dense<0.000000e+00> : vector<16x128xf32>
    %68 = tpu.matmul %66, %67, %cst_29 {dimension_numbers = #tpu.dot_dimension_numbers<[1], [0], [0], [1], [0, 0, 1, 1], [], []>} : vector<16x128xbf16>, vector<128x128xbf16>, vector<16x128xf32> -> vector<16x128xf32>
    %69 = vector.broadcast %4 : vector<1x128xf32> to vector<16x128xf32>
    %70 = arith.addf %68, %69 : vector<16x128xf32>
    %cst_30 = arith.constant dense<0.000000e+00> : vector<16xf32>
    %71 = vector.multi_reduction <add>, %70, %cst_30 [1] : vector<16x128xf32> to vector<16xf32>
    %72 = vector.shape_cast %71 : vector<16xf32> to vector<16x1xf32>
    %cst_31 = arith.constant 1.280000e+02 : f32
    %73 = vector.broadcast %cst_31 : f32 to vector<16x1xf32>
    %74 = arith.divf %72, %73 : vector<16x1xf32>
    %75 = vector.broadcast %74 : vector<16x1xf32> to vector<16x128xf32>
    %76 = arith.subf %70, %75 : vector<16x128xf32>
    %77 = arith.mulf %76, %76 : vector<16x128xf32>
    %cst_32 = arith.constant dense<0.000000e+00> : vector<16xf32>
    %78 = vector.multi_reduction <add>, %77, %cst_32 [1] : vector<16x128xf32> to vector<16xf32>
    %79 = vector.shape_cast %78 : vector<16xf32> to vector<16x1xf32>
    %cst_33 = arith.constant 1.280000e+02 : f32
    %80 = vector.broadcast %cst_33 : f32 to vector<16x1xf32>
    %81 = arith.divf %79, %80 : vector<16x1xf32>
    %cst_34 = arith.constant 9.99999974E-6 : f32
    %82 = vector.broadcast %cst_34 : f32 to vector<16x1xf32>
    %83 = arith.addf %81, %82 : vector<16x1xf32>
    %84 = math.rsqrt %83 : vector<16x1xf32>
    %85 = vector.broadcast %84 : vector<16x1xf32> to vector<16x128xf32>
    %86 = arith.mulf %76, %85 : vector<16x128xf32>
    %87 = vector.broadcast %5 : vector<1x128xf32> to vector<16x128xf32>
    %88 = arith.mulf %86, %87 : vector<16x128xf32>
    %89 = vector.broadcast %6 : vector<1x128xf32> to vector<16x128xf32>
    %90 = arith.addf %88, %89 : vector<16x128xf32>
    %cst_35 = arith.constant 0.000000e+00 : f32
    %91 = vector.broadcast %cst_35 : f32 to vector<16x128xf32>
    %92 = arith.maximumf %90, %91 : vector<16x128xf32>
    %c0_36 = arith.constant 0 : index
    %c0_37 = arith.constant 0 : index
    %93 = vector.load %arg9[%c0_36, %c0_37] : memref<16x128xf32, #tpu.memory_space<vmem>>, vector<16x128xf32>
    tpu.vector_store %arg9[%c0_36, %c0_37], %92 {strides = array<i32>} : memref<16x128xf32, #tpu.memory_space<vmem>>, vector<16x128xf32>,
    return
  }
  func.func @transform_0(%arg0: i32) -> (i32, i32) {
    %c0_i32 = arith.constant 0 : i32
    %c0_i32_0 = arith.constant 0 : i32
    return %arg0, %c0_i32 : i32, i32
  }
  func.func @transform_1(%arg0: i32) -> (i32, i32) {
    %c0_i32 = arith.constant 0 : i32
    %c0_i32_0 = arith.constant 0 : i32
    %c0_i32_1 = arith.constant 0 : i32
    return %c0_i32, %c0_i32_0 : i32, i32
  }
  func.func @transform_2(%arg0: i32) -> (i32, i32) {
    %c0_i32 = arith.constant 0 : i32
    %c0_i32_0 = arith.constant 0 : i32
    %c0_i32_1 = arith.constant 0 : i32
    return %c0_i32, %c0_i32_0 : i32, i32
  }
  func.func @transform_3(%arg0: i32) -> (i32, i32) {
    %c0_i32 = arith.constant 0 : i32
    %c0_i32_0 = arith.constant 0 : i32
    %c0_i32_1 = arith.constant 0 : i32
    return %c0_i32, %c0_i32_0 : i32, i32
  }
  func.func @transform_4(%arg0: i32) -> (i32, i32) {
    %c0_i32 = arith.constant 0 : i32
    %c0_i32_0 = arith.constant 0 : i32
    %c0_i32_1 = arith.constant 0 : i32
    return %c0_i32, %c0_i32_0 : i32, i32
  }
  func.func @transform_5(%arg0: i32) -> (i32, i32) {
    %c0_i32 = arith.constant 0 : i32
    %c0_i32_0 = arith.constant 0 : i32
    %c0_i32_1 = arith.constant 0 : i32
    return %c0_i32, %c0_i32_0 : i32, i32
  }
  func.func @transform_6(%arg0: i32) -> (i32, i32) {
    %c0_i32 = arith.constant 0 : i32
    %c0_i32_0 = arith.constant 0 : i32
    %c0_i32_1 = arith.constant 0 : i32
    return %c0_i32, %c0_i32_0 : i32, i32
  }
  func.func @transform_7(%arg0: i32) -> (i32, i32) {
    %c0_i32 = arith.constant 0 : i32
    %c0_i32_0 = arith.constant 0 : i32
    %c0_i32_1 = arith.constant 0 : i32
    return %c0_i32, %c0_i32_0 : i32, i32
  }
  func.func @transform_8(%arg0: i32) -> (i32, i32) {
    %c0_i32 = arith.constant 0 : i32
    %c0_i32_0 = arith.constant 0 : i32
    return %arg0, %c0_i32 : i32, i32
  }
}

</mosaic_0001>

<llo_original>
// kernel: tpu_custom_call.1
$region0: #{tpu_custom_call.1}
  #allocation0 [shape = 'u32[]', space=smem, size = 0x4, offset = 0x4, fixed_abs, tag = 'smem constant byte address 0x4 - core index']
  #allocation1 [shape = 'u32[72,128]{1,0:T(1,128)}', space=vmem, size = 0x9000, scoped, tag = 'internal scratch']
  %s0 = inlined_call_operand.hbm [shape: bf16[16,768], index: 0, kind: input, shape index: {}]
  %s1 = inlined_call_operand.vmem [shape: bf16[128,128], index: 1, kind: input, shape index: {}]
  %s2 = inlined_call_operand.hbm [shape: bf16[384,128], index: 2, kind: input, shape index: {}]
  %s3 = inlined_call_operand.hbm [shape: bf16[256,128], index: 3, kind: input, shape index: {}]
  %s4 = inlined_call_operand.hbm [shape: bf16[384,128], index: 4, kind: input, shape index: {}]
  %s5 = inlined_call_operand.vmem [shape: bf16[128,3], index: 5, kind: input, shape index: {}]
  %s6 = inlined_call_operand.hbm [shape: bf16[128,128], index: 6, kind: input, shape index: {}]
  %s7 = inlined_call_operand.vmem [shape: f32[8,128], index: 7, kind: input, shape index: {}]
  %s8 = inlined_call_operand.hbm [shape: f32[16,128], index: 8, kind: output, shape index: {}]
  %s9 = sld [smem:[#allocation0]]
  $region62: #{tpu_custom_call.1} parent=0
    _
  %s11 = ssub.s32 1, %s9
  %s12 = scalar_select 0, %s11, %s9
  $region1: #{tpu_custom_call.1} parent=0
    #allocation2 [shape = 'u8[24576]{0}', space=vmem, size = 0x6000, scoped, tag = 'input window, operand 0, single buffered']
    #allocation3 [shape = 's32[1]{0}', space=sflag, size = 0x4, scoped, tag = 'scoped memory for tpu_custom_call.1']
    #allocation4 [shape = 's32[1]{0}', space=sflag, size = 0x4, scoped, tag = 'scoped memory for tpu_custom_call.1']
    #allocation5 [shape = 'u8[98304]{0}', space=vmem, size = 0x18000, scoped, tag = 'input window, operand 2, single buffered']
    #allocation6 [shape = 's32[1]{0}', space=sflag, size = 0x4, scoped, tag = 'scoped memory for tpu_custom_call.1']
    #allocation7 [shape = 'u8[65536]{0}', space=vmem, size = 0x10000, scoped, tag = 'input window, operand 3, single buffered']
    #allocation8 [shape = 'u8[98304]{0}', space=vmem, size = 0x18000, scoped, tag = 'input window, operand 4, single buffered']
    #allocation9 [shape = 's32[1]{0}', space=sflag, size = 0x4, scoped, tag = 'scoped memory for tpu_custom_call.1']
    #allocation10 [shape = 'u8[32768]{0}', space=vmem, size = 0x8000, scoped, tag = 'input window, operand 6, single buffered']
    #allocation11 [shape = 'u8[8192]{0}', space=vmem, size = 0x2000, scoped, tag = 'output window, operand 0, single buffered']
    %13 = vsyncpa [#allocation3], 0
    %14 = vsyncpa [#allocation6], 0
    %15 = vsyncpa [#allocation9], 0
    %16 = vsyncpa [#allocation4], 0
    // Predicated region
    $region2: #{tpu_custom_call.1} parent=1 // pred_check
      _
    $region3: #{tpu_custom_call.1} parent=1 // pred_check_branch
      %18 = sbr.rel (0) target = $region5
    $region4: #{tpu_custom_call.1} parent=1 // pred_region
      %20 = vsyncadd [#allocation3], 0
      %s21 = sshll.u32 %s0, 4
      %s22 = int_to_ptr.hbm [resolvable:$true] %s21
      %s23 = sshll.u32 [#allocation2], 4
      %s24 = int_to_ptr.vmem [resolvable:$true] %s23
      %29 = dma.hbm_to_vmem [thread:$0]  %s22, 768, %s24, [#allocation3], 384, 384, 24
    $region5: #{tpu_custom_call.1} parent=1 // pred_fallthru
      _
    // Predicated region
    $region6: #{tpu_custom_call.1} parent=1 // pred_check
      _
    $region7: #{tpu_custom_call.1} parent=1 // pred_check_branch
      %31 = sbr.rel (0) target = $region9
    $region8: #{tpu_custom_call.1} parent=1 // pred_region
      _
    $region9: #{tpu_custom_call.1} parent=1 // pred_fallthru
      _
    // Predicated region
    $region10: #{tpu_custom_call.1} parent=1 // pred_check
      _
    $region11: #{tpu_custom_call.1} parent=1 // pred_check_branch
      %33 = sbr.rel (0) target = $region13
    $region12: #{tpu_custom_call.1} parent=1 // pred_region
      %35 = vsyncadd [#allocation6], 0
      %s36 = sshll.u32 %s2, 4
      %s37 = int_to_ptr.hbm [resolvable:$true] %s36
      %s38 = sshll.u32 [#allocation5], 4
      %s39 = int_to_ptr.vmem [resolvable:$true] %s38
      %44 = dma.hbm_to_vmem [thread:$0]  %s37, 3072, %s39, [#allocation6], 64, 64, 4
    $region13: #{tpu_custom_call.1} parent=1 // pred_fallthru
      _
    // Predicated region
    $region14: #{tpu_custom_call.1} parent=1 // pred_check
      _
    $region15: #{tpu_custom_call.1} parent=1 // pred_check_branch
      %46 = sbr.rel (0) target = $region17
    $region16: #{tpu_custom_call.1} parent=1 // pred_region
      %48 = vsyncadd [#allocation6], 0
      %s49 = sshll.u32 %s3, 4
      %s50 = int_to_ptr.hbm [resolvable:$true] %s49
      %s51 = sshll.u32 [#allocation7], 4
      %s52 = int_to_ptr.vmem [resolvable:$true] %s51
      %57 = dma.hbm_to_vmem [thread:$0]  %s50, 2048, %s52, [#allocation6], 64, 64, 4
    $region17: #{tpu_custom_call.1} parent=1 // pred_fallthru
      _
    // Predicated region
    $region18: #{tpu_custom_call.1} parent=1 // pred_check
      _
    $region19: #{tpu_custom_call.1} parent=1 // pred_check_branch
      %59 = sbr.rel (0) target = $region21
    $region20: #{tpu_custom_call.1} parent=1 // pred_region
      %61 = vsyncadd [#allocation9], 0
      %s62 = sshll.u32 %s4, 4
      %s63 = int_to_ptr.hbm [resolvable:$true] %s62
      %s64 = sshll.u32 [#allocation8], 4
      %s65 = int_to_ptr.vmem [resolvable:$true] %s64
      %70 = dma.hbm_to_vmem [thread:$0]  %s63, 3072, %s65, [#allocation9], 64, 64, 4
    $region21: #{tpu_custom_call.1} parent=1 // pred_fallthru
      _
    // Predicated region
    $region22: #{tpu_custom_call.1} parent=1 // pred_check
      _
    $region23: #{tpu_custom_call.1} parent=1 // pred_check_branch
      %72 = sbr.rel (0) target = $region25
    $region24: #{tpu_custom_call.1} parent=1 // pred_region
      _
    $region25: #{tpu_custom_call.1} parent=1 // pred_fallthru
      _
    // Predicated region
    $region26: #{tpu_custom_call.1} parent=1 // pred_check
      _
    $region27: #{tpu_custom_call.1} parent=1 // pred_check_branch
      %74 = sbr.rel (0) target = $region29
    $region28: #{tpu_custom_call.1} parent=1 // pred_region
      %76 = vsyncadd [#allocation9], 0
      %s77 = sshll.u32 %s6, 4
      %s78 = int_to_ptr.hbm [resolvable:$true] %s77
      %s79 = sshll.u32 [#allocation10], 4
      %s80 = int_to_ptr.vmem [resolvable:$true] %s79
      %85 = dma.hbm_to_vmem [thread:$0]  %s78, 1024, %s80, [#allocation9], 64, 64, 4
    $region29: #{tpu_custom_call.1} parent=1 // pred_fallthru
      _
    // Predicated region
    $region30: #{tpu_custom_call.1} parent=1 // pred_check
      _
    $region31: #{tpu_custom_call.1} parent=1 // pred_check_branch
      %87 = sbr.rel (0) target = $region33
    $region32: #{tpu_custom_call.1} parent=1 // pred_region
      _
    $region33: #{tpu_custom_call.1} parent=1 // pred_fallthru
      _
    // Predicated region
    $region34: #{tpu_custom_call.1} parent=1 // pred_check
      _
    $region35: #{tpu_custom_call.1} parent=1 // pred_check_branch
      %89 = sbr.rel (0) target = $region37
    $region36: #{tpu_custom_call.1} parent=1 // pred_region
      %91 = dma.done [#allocation3], 768
    $region37: #{tpu_custom_call.1} parent=1 // pred_fallthru
      _
    // Predicated region
    $region38: #{tpu_custom_call.1} parent=1 // pred_check
      _
    $region39: #{tpu_custom_call.1} parent=1 // pred_check_branch
      %93 = sbr.rel (0) target = $region41
    $region40: #{tpu_custom_call.1} parent=1 // pred_region
      %95 = dma.done [#allocation6], 3072
    $region41: #{tpu_custom_call.1} parent=1 // pred_fallthru
      _
    // Predicated region
    $region42: #{tpu_custom_call.1} parent=1 // pred_check
      _
    $region43: #{tpu_custom_call.1} parent=1 // pred_check_branch
      %97 = sbr.rel (0) target = $region45
    $region44: #{tpu_custom_call.1} parent=1 // pred_region
      %99 = dma.done [#allocation6], 2048
    $region45: #{tpu_custom_call.1} parent=1 // pred_fallthru
      _
    // Predicated region
    $region46: #{tpu_custom_call.1} parent=1 // pred_check
      _
    $region47: #{tpu_custom_call.1} parent=1 // pred_check_branch
      %101 = sbr.rel (0) target = $region49
    $region48: #{tpu_custom_call.1} parent=1 // pred_region
      %103 = dma.done [#allocation9], 3072
    $region49: #{tpu_custom_call.1} parent=1 // pred_fallthru
      _
    // Predicated region
    $region50: #{tpu_custom_call.1} parent=1 // pred_check
      _
    $region51: #{tpu_custom_call.1} parent=1 // pred_check_branch
      %105 = sbr.rel (0) target = $region53
    $region52: #{tpu_custom_call.1} parent=1 // pred_region
      %107 = dma.done [#allocation9], 1024
    $region53: #{tpu_custom_call.1} parent=1 // pred_fallthru
      _
    %v108 = vld [vmem:[%s7] sm:$0x1]
    %v109 = vld [vmem:[%s7 + $0x1] sm:$0x1]
    %v110 = vld [vmem:[%s7 + $0x2] sm:$0x1]
    %v111 = vld [vmem:[%s7 + $0x3] sm:$0x1]
    %v112 = vld [vmem:[%s7 + $0x4] sm:$0x1]
    %v113 = vld [vmem:[%s7 + $0x5] sm:$0x1]
    %v114 = vld [vmem:[%s7 + $0x6] sm:$0x1]
    %v115 = vld [vmem:[%s7 + $0x7] sm:$0x1]
    %v116 = vld [vmem:[#allocation2] sm:$0xf]
    %v117 = vld [vmem:[#allocation2 + $0x18] sm:$0xf]
    %v118 = vld [vmem:[#allocation2 + $0x4] sm:$0xff]
    %v119 = vld [vmem:[#allocation2 + $0xc] sm:$0xf]
    %v120 = vld [vmem:[#allocation2 + $0x1c] sm:$0xff]
    %v121 = vld [vmem:[#allocation2 + $0x24] sm:$0xf]
    %v122 = vld [vmem:[#allocation2 + $0x10] sm:$0xff]
    %v123 = vld [vmem:[#allocation2 + $0x28] sm:$0xff]
    %v124 = vld [vmem:[%s1] sm:$0xf]
    %v125 = vld [vmem:[%s1 + $0x4] sm:$0xf]
    %v126 = vld [vmem:[%s1 + $0x8] sm:$0xf]
    %v127 = vld [vmem:[%s1 + $0xc] sm:$0xf]
    %v128 = vld [vmem:[%s1 + $0x10] sm:$0xf]
    %v129 = vld [vmem:[%s1 + $0x14] sm:$0xf]
    %v130 = vld [vmem:[%s1 + $0x18] sm:$0xf]
    %v131 = vld [vmem:[%s1 + $0x1c] sm:$0xf]
    %v132 = vld [vmem:[%s1 + $0x20] sm:$0xf]
    %v133 = vld [vmem:[%s1 + $0x24] sm:$0xf]
    %v134 = vld [vmem:[%s1 + $0x28] sm:$0xf]
    %v135 = vld [vmem:[%s1 + $0x2c] sm:$0xf]
    %v136 = vld [vmem:[%s1 + $0x30] sm:$0xf]
    %v137 = vld [vmem:[%s1 + $0x34] sm:$0xf]
    %v138 = vld [vmem:[%s1 + $0x38] sm:$0xf]
    %v139 = vld [vmem:[%s1 + $0x3c] sm:$0xf]
    %v140 = vperm.slane %v108, 0
    %v143 = vunpack.c.l.b16 %v116
    %v144 = vunpack.c.l.b16 %v117
    %v145 = vpack.c.b16 %v144, %v143
    %v163 = vunpack.c.l.b16 %v124
    %v164 = vunpack.c.l.b16 %v125
    %v165 = vunpack.c.l.b16 %v126
    %v166 = vunpack.c.l.b16 %v127
    %v167 = vunpack.c.l.b16 %v128
    %v168 = vunpack.c.l.b16 %v129
    %v169 = vunpack.c.l.b16 %v130
    %v170 = vunpack.c.l.b16 %v131
    %v171 = vunpack.c.l.b16 %v132
    %v172 = vunpack.c.l.b16 %v133
    %v173 = vunpack.c.l.b16 %v134
    %v174 = vunpack.c.l.b16 %v135
    %v175 = vunpack.c.l.b16 %v136
    %v176 = vunpack.c.l.b16 %v137
    %v177 = vunpack.c.l.b16 %v138
    %v178 = vunpack.c.l.b16 %v139
    %v179 = vpack.c.b16 %v164, %v163
    %v180 = vpack.c.b16 %v166, %v165
    %v181 = vpack.c.b16 %v168, %v167
    %v182 = vpack.c.b16 %v170, %v169
    %v183 = vpack.c.b16 %v172, %v171
    %v184 = vpack.c.b16 %v174, %v173
    %v185 = vpack.c.b16 %v176, %v175
    %v186 = vpack.c.b16 %v178, %v177
    %195 = vmatpush.bf16.msra.mxu0 %v186
    %196 = vmatpush.bf16.msra.mxu0 %v185
    %197 = vmatpush.bf16.msra.mxu0 %v184
    %198 = vmatpush.bf16.msra.mxu0 %v183
    %199 = vmatpush.bf16.msra.mxu0 %v182
    %200 = vmatpush.bf16.msra.mxu0 %v181
    %201 = vmatpush.bf16.msra.mxu0 %v180
    %202 = vmatpush.bf16.msra.mxu0 %v179
    %203 = vmatmul.bf16.gmra.mxu0 %v145
    %v204 = vpop.f32.mrf.mxu0
    %v205 = vadd.f32 %v140, %v204
    %v206 = vpop.f32.mrf.mxu0
    %v207 = vadd.f32 %v140, %v206
    %208 = vdwg.mxu0
    %v209 = vpack.c.bf16 %v205, %v205
    %v210 = vpack.c.bf16 %v207, %v207
    %v211 = vld [vmem:[#allocation5] sm:$0xf]
    %v212 = vld [vmem:[#allocation5 + $0x4] sm:$0xf]
    %v213 = vld [vmem:[#allocation5 + $0x8] sm:$0xf]
    %v214 = vld [vmem:[#allocation5 + $0xc] sm:$0xf]
    %v215 = vld [vmem:[#allocation5 + $0x10] sm:$0xf]
    %v216 = vld [vmem:[#allocation5 + $0x14] sm:$0xf]
    %v217 = vld [vmem:[#allocation5 + $0x18] sm:$0xf]
    %v218 = vld [vmem:[#allocation5 + $0x1c] sm:$0xf]
    %v219 = vld [vmem:[#allocation5 + $0x20] sm:$0xf]
    %v220 = vld [vmem:[#allocation5 + $0x24] sm:$0xf]
    %v221 = vld [vmem:[#allocation5 + $0x28] sm:$0xf]
    %v222 = vld [vmem:[#allocation5 + $0x2c] sm:$0xf]
    %v223 = vld [vmem:[#allocation5 + $0x30] sm:$0xf]
    %v224 = vld [vmem:[#allocation5 + $0x34] sm:$0xf]
    %v225 = vld [vmem:[#allocation5 + $0x38] sm:$0xf]
    %v226 = vld [vmem:[#allocation5 + $0x3c] sm:$0xf]
    %v227 = vld [vmem:[#allocation5 + $0x40] sm:$0xf]
    %v228 = vld [vmem:[#allocation5 + $0x44] sm:$0xf]
    %v229 = vld [vmem:[#allocation5 + $0x48] sm:$0xf]
    %v230 = vld [vmem:[#allocation5 + $0x4c] sm:$0xf]
    %v231 = vld [vmem:[#allocation5 + $0x50] sm:$0xf]
    %v232 = vld [vmem:[#allocation5 + $0x54] sm:$0xf]
    %v233 = vld [vmem:[#allocation5 + $0x58] sm:$0xf]
    %v234 = vld [vmem:[#allocation5 + $0x5c] sm:$0xf]
    %v235 = vld [vmem:[#allocation5 + $0x60] sm:$0xf]
    %v236 = vld [vmem:[#allocation5 + $0x64] sm:$0xf]
    %v237 = vld [vmem:[#allocation5 + $0x68] sm:$0xf]
    %v238 = vld [vmem:[#allocation5 + $0x6c] sm:$0xf]
    %v239 = vld [vmem:[#allocation5 + $0x70] sm:$0xf]
    %v240 = vld [vmem:[#allocation5 + $0x74] sm:$0xf]
    %v241 = vld [vmem:[#allocation5 + $0x78] sm:$0xf]
    %v242 = vld [vmem:[#allocation5 + $0x7c] sm:$0xf]
    %v243 = vld [vmem:[#allocation5 + $0x80] sm:$0xf]
    %v244 = vld [vmem:[#allocation5 + $0x84] sm:$0xf]
    %v245 = vld [vmem:[#allocation5 + $0x88] sm:$0xf]
    %v246 = vld [vmem:[#allocation5 + $0x8c] sm:$0xf]
    %v247 = vld [vmem:[#allocation5 + $0x90] sm:$0xf]
    %v248 = vld [vmem:[#allocation5 + $0x94] sm:$0xf]
    %v249 = vld [vmem:[#allocation5 + $0x98] sm:$0xf]
    %v250 = vld [vmem:[#allocation5 + $0x9c] sm:$0xf]
    %v251 = vld [vmem:[#allocation5 + $0xa0] sm:$0xf]
    %v252 = vld [vmem:[#allocation5 + $0xa4] sm:$0xf]
    %v253 = vld [vmem:[#allocation5 + $0xa8] sm:$0xf]
    %v254 = vld [vmem:[#allocation5 + $0xac] sm:$0xf]
    %v255 = vld [vmem:[#allocation5 + $0xb0] sm:$0xf]
    %v256 = vld [vmem:[#allocation5 + $0xb4] sm:$0xf]
    %v257 = vld [vmem:[#allocation5 + $0xb8] sm:$0xf]
    %v258 = vld [vmem:[#allocation5 + $0xbc] sm:$0xf]
    %v259 = vperm.slane %v109, 0
    %v264 = vunpack.c.l.b16 %v118
    %v265 = vunpack.c.h.b16 %v118
    %v266 = vunpack.c.l.b16 %v119
    %v267 = vunpack.c.l.b16 %v120
    %v268 = vunpack.c.h.b16 %v120
    %v269 = vunpack.c.l.b16 %v121
    %v270 = vpack.c.b16 %v267, %v264
    %v271 = vpack.c.b16 %v268, %v265
    %v272 = vpack.c.b16 %v269, %v266
    %v324 = vunpack.c.l.b16 %v211
    %v325 = vunpack.c.l.b16 %v212
    %v326 = vunpack.c.l.b16 %v213
    %v327 = vunpack.c.l.b16 %v214
    %v328 = vunpack.c.l.b16 %v215
    %v329 = vunpack.c.l.b16 %v216
    %v330 = vunpack.c.l.b16 %v217
    %v331 = vunpack.c.l.b16 %v218
    %v332 = vunpack.c.l.b16 %v219
    %v333 = vunpack.c.l.b16 %v220
    %v334 = vunpack.c.l.b16 %v221
    %v335 = vunpack.c.l.b16 %v222
    %v336 = vunpack.c.l.b16 %v223
    %v337 = vunpack.c.l.b16 %v224
    %v338 = vunpack.c.l.b16 %v225
    %v339 = vunpack.c.l.b16 %v226
    %v340 = vunpack.c.l.b16 %v227
    %v341 = vunpack.c.l.b16 %v228
    %v342 = vunpack.c.l.b16 %v229
    %v343 = vunpack.c.l.b16 %v230
    %v344 = vunpack.c.l.b16 %v231
    %v345 = vunpack.c.l.b16 %v232
    %v346 = vunpack.c.l.b16 %v233
    %v347 = vunpack.c.l.b16 %v234
    %v348 = vunpack.c.l.b16 %v235
    %v349 = vunpack.c.l.b16 %v236
    %v350 = vunpack.c.l.b16 %v237
    %v351 = vunpack.c.l.b16 %v238
    %v352 = vunpack.c.l.b16 %v239
    %v353 = vunpack.c.l.b16 %v240
    %v354 = vunpack.c.l.b16 %v241
    %v355 = vunpack.c.l.b16 %v242
    %v356 = vunpack.c.l.b16 %v243
    %v357 = vunpack.c.l.b16 %v244
    %v358 = vunpack.c.l.b16 %v245
    %v359 = vunpack.c.l.b16 %v246
    %v360 = vunpack.c.l.b16 %v247
    %v361 = vunpack.c.l.b16 %v248
    %v362 = vunpack.c.l.b16 %v249
    %v363 = vunpack.c.l.b16 %v250
    %v364 = vunpack.c.l.b16 %v251
    %v365 = vunpack.c.l.b16 %v252
    %v366 = vunpack.c.l.b16 %v253
    %v367 = vunpack.c.l.b16 %v254
    %v368 = vunpack.c.l.b16 %v255
    %v369 = vunpack.c.l.b16 %v256
    %v370 = vunpack.c.l.b16 %v257
    %v371 = vunpack.c.l.b16 %v258
    %v372 = vpack.c.b16 %v325, %v324
    %v373 = vpack.c.b16 %v327, %v326
    %v374 = vpack.c.b16 %v329, %v328
    %v375 = vpack.c.b16 %v331, %v330
    %v376 = vpack.c.b16 %v333, %v332
    %v377 = vpack.c.b16 %v335, %v334
    %v378 = vpack.c.b16 %v337, %v336
    %v379 = vpack.c.b16 %v339, %v338
    %v380 = vpack.c.b16 %v341, %v340
    %v381 = vpack.c.b16 %v343, %v342
    %v382 = vpack.c.b16 %v345, %v344
    %v383 = vpack.c.b16 %v347, %v346
    %v384 = vpack.c.b16 %v349, %v348
    %v385 = vpack.c.b16 %v351, %v350
    %v386 = vpack.c.b16 %v353, %v352
    %v387 = vpack.c.b16 %v355, %v354
    %v388 = vpack.c.b16 %v357, %v356
    %v389 = vpack.c.b16 %v359, %v358
    %v390 = vpack.c.b16 %v361, %v360
    %v391 = vpack.c.b16 %v363, %v362
    %v392 = vpack.c.b16 %v365, %v364
    %v393 = vpack.c.b16 %v367, %v366
    %v394 = vpack.c.b16 %v369, %v368
    %v395 = vpack.c.b16 %v371, %v370
    %420 = vmatpush.bf16.msra.mxu0 %v379
    %421 = vmatpush.bf16.msra.mxu0 %v378
    %422 = vmatpush.bf16.msra.mxu0 %v377
    %423 = vmatpush.bf16.msra.mxu0 %v376
    %424 = vmatpush.bf16.msra.mxu0 %v375
    %425 = vmatpush.bf16.msra.mxu0 %v374
    %426 = vmatpush.bf16.msra.mxu0 %v373
    %427 = vmatpush.bf16.msra.mxu0 %v372
    %428 = vmatmul.bf16.gmra.mxu0 %v270
    %v429 = vpop.f32.mrf.mxu0
    %v430 = vadd.f32 %v259, %v429
    %v431 = vpop.f32.mrf.mxu0
    %v432 = vadd.f32 %v259, %v431
    %433 = vdwg.mxu0
    %434 = vmatpush.bf16.msra.mxu0 %v387
    %435 = vmatpush.bf16.msra.mxu0 %v386
    %436 = vmatpush.bf16.msra.mxu0 %v385
    %437 = vmatpush.bf16.msra.mxu0 %v384
    %438 = vmatpush.bf16.msra.mxu0 %v383
    %439 = vmatpush.bf16.msra.mxu0 %v382
    %440 = vmatpush.bf16.msra.mxu0 %v381
    %441 = vmatpush.bf16.msra.mxu0 %v380
    %442 = vmatmul.bf16.gmra.mxu0 %v271
    %v443 = vpop.f32.mrf.mxu0
    %v444 = vadd.f32 %v430, %v443
    %v445 = vpop.f32.mrf.mxu0
    %v446 = vadd.f32 %v432, %v445
    %447 = vdwg.mxu0
    %448 = vmatpush.bf16.msra.mxu0 %v395
    %449 = vmatpush.bf16.msra.mxu0 %v394
    %450 = vmatpush.bf16.msra.mxu0 %v393
    %451 = vmatpush.bf16.msra.mxu0 %v392
    %452 = vmatpush.bf16.msra.mxu0 %v391
    %453 = vmatpush.bf16.msra.mxu0 %v390
    %454 = vmatpush.bf16.msra.mxu0 %v389
    %455 = vmatpush.bf16.msra.mxu0 %v388
    %456 = vmatmul.bf16.gmra.mxu0 %v272
    %v457 = vpop.f32.mrf.mxu0
    %v458 = vadd.f32 %v444, %v457
    %v459 = vpop.f32.mrf.mxu0
    %v460 = vadd.f32 %v446, %v459
    %461 = vdwg.mxu0
    %v462 = vpack.c.bf16 %v458, %v458
    %v463 = vpack.c.bf16 %v460, %v460
    %v464 = vld [vmem:[#allocation7] sm:$0xf]
    %v465 = vld [vmem:[#allocation7 + $0x4] sm:$0xf]
    %v466 = vld [vmem:[#allocation7 + $0x8] sm:$0xf]
    %v467 = vld [vmem:[#allocation7 + $0xc] sm:$0xf]
    %v468 = vld [vmem:[#allocation7 + $0x10] sm:$0xf]
    %v469 = vld [vmem:[#allocation7 + $0x14] sm:$0xf]
    %v470 = vld [vmem:[#allocation7 + $0x18] sm:$0xf]
    %v471 = vld [vmem:[#allocation7 + $0x1c] sm:$0xf]
    %v472 = vld [vmem:[#allocation7 + $0x20] sm:$0xf]
    %v473 = vld [vmem:[#allocation7 + $0x24] sm:$0xf]
    %v474 = vld [vmem:[#allocation7 + $0x28] sm:$0xf]
    %v475 = vld [vmem:[#allocation7 + $0x2c] sm:$0xf]
    %v476 = vld [vmem:[#allocation7 + $0x30] sm:$0xf]
    %v477 = vld [vmem:[#allocation7 + $0x34] sm:$0xf]
    %v478 = vld [vmem:[#allocation7 + $0x38] sm:$0xf]
    %v479 = vld [vmem:[#allocation7 + $0x3c] sm:$0xf]
    %v480 = vld [vmem:[#allocation7 + $0x40] sm:$0xf]
    %v481 = vld [vmem:[#allocation7 + $0x44] sm:$0xf]
    %v482 = vld [vmem:[#allocation7 + $0x48] sm:$0xf]
    %v483 = vld [vmem:[#allocation7 + $0x4c] sm:$0xf]
    %v484 = vld [vmem:[#allocation7 + $0x50] sm:$0xf]
    %v485 = vld [vmem:[#allocation7 + $0x54] sm:$0xf]
    %v486 = vld [vmem:[#allocation7 + $0x58] sm:$0xf]
    %v487 = vld [vmem:[#allocation7 + $0x5c] sm:$0xf]
    %v488 = vld [vmem:[#allocation7 + $0x60] sm:$0xf]
    %v489 = vld [vmem:[#allocation7 + $0x64] sm:$0xf]
    %v490 = vld [vmem:[#allocation7 + $0x68] sm:$0xf]
    %v491 = vld [vmem:[#allocation7 + $0x6c] sm:$0xf]
    %v492 = vld [vmem:[#allocation7 + $0x70] sm:$0xf]
    %v493 = vld [vmem:[#allocation7 + $0x74] sm:$0xf]
    %v494 = vld [vmem:[#allocation7 + $0x78] sm:$0xf]
    %v495 = vld [vmem:[#allocation7 + $0x7c] sm:$0xf]
    %v496 = vperm.slane %v110, 0
    %v499 = vunpack.c.l.b16 %v122
    %v500 = vunpack.c.h.b16 %v122
    %v501 = vunpack.c.l.b16 %v123
    %v502 = vunpack.c.h.b16 %v123
    %v503 = vpack.c.b16 %v501, %v499
    %v504 = vpack.c.b16 %v502, %v500
    %v539 = vunpack.c.l.b16 %v464
    %v540 = vunpack.c.l.b16 %v465
    %v541 = vunpack.c.l.b16 %v466
    %v542 = vunpack.c.l.b16 %v467
    %v543 = vunpack.c.l.b16 %v468
    %v544 = vunpack.c.l.b16 %v469
    %v545 = vunpack.c.l.b16 %v470
    %v546 = vunpack.c.l.b16 %v471
    %v547 = vunpack.c.l.b16 %v472
    %v548 = vunpack.c.l.b16 %v473
    %v549 = vunpack.c.l.b16 %v474
    %v550 = vunpack.c.l.b16 %v475
    %v551 = vunpack.c.l.b16 %v476
    %v552 = vunpack.c.l.b16 %v477
    %v553 = vunpack.c.l.b16 %v478
    %v554 = vunpack.c.l.b16 %v479
    %v555 = vunpack.c.l.b16 %v480
    %v556 = vunpack.c.l.b16 %v481
    %v557 = vunpack.c.l.b16 %v482
    %v558 = vunpack.c.l.b16 %v483
    %v559 = vunpack.c.l.b16 %v484
    %v560 = vunpack.c.l.b16 %v485
    %v561 = vunpack.c.l.b16 %v486
    %v562 = vunpack.c.l.b16 %v487
    %v563 = vunpack.c.l.b16 %v488
    %v564 = vunpack.c.l.b16 %v489
    %v565 = vunpack.c.l.b16 %v490
    %v566 = vunpack.c.l.b16 %v491
    %v567 = vunpack.c.l.b16 %v492
    %v568 = vunpack.c.l.b16 %v493
    %v569 = vunpack.c.l.b16 %v494
    %v570 = vunpack.c.l.b16 %v495
    %v571 = vpack.c.b16 %v540, %v539
    %v572 = vpack.c.b16 %v542, %v541
    %v573 = vpack.c.b16 %v544, %v543
    %v574 = vpack.c.b16 %v546, %v545
    %v575 = vpack.c.b16 %v548, %v547
    %v576 = vpack.c.b16 %v550, %v549
    %v577 = vpack.c.b16 %v552, %v551
    %v578 = vpack.c.b16 %v554, %v553
    %v579 = vpack.c.b16 %v556, %v555
    %v580 = vpack.c.b16 %v558, %v557
    %v581 = vpack.c.b16 %v560, %v559
    %v582 = vpack.c.b16 %v562, %v561
    %v583 = vpack.c.b16 %v564, %v563
    %v584 = vpack.c.b16 %v566, %v565
    %v585 = vpack.c.b16 %v568, %v567
    %v586 = vpack.c.b16 %v570, %v569
    %603 = vmatpush.bf16.msra.mxu0 %v578
    %604 = vmatpush.bf16.msra.mxu0 %v577
    %605 = vmatpush.bf16.msra.mxu0 %v576
    %606 = vmatpush.bf16.msra.mxu0 %v575
    %607 = vmatpush.bf16.msra.mxu0 %v574
    %608 = vmatpush.bf16.msra.mxu0 %v573
    %609 = vmatpush.bf16.msra.mxu0 %v572
    %610 = vmatpush.bf16.msra.mxu0 %v571
    %611 = vmatmul.bf16.gmra.mxu0 %v503
    %v612 = vpop.f32.mrf.mxu0
    %v613 = vadd.f32 %v496, %v612
    %v614 = vpop.f32.mrf.mxu0
    %v615 = vadd.f32 %v496, %v614
    %616 = vdwg.mxu0
    %617 = vmatpush.bf16.msra.mxu0 %v586
    %618 = vmatpush.bf16.msra.mxu0 %v585
    %619 = vmatpush.bf16.msra.mxu0 %v584
    %620 = vmatpush.bf16.msra.mxu0 %v583
    %621 = vmatpush.bf16.msra.mxu0 %v582
    %622 = vmatpush.bf16.msra.mxu0 %v581
    %623 = vmatpush.bf16.msra.mxu0 %v580
    %624 = vmatpush.bf16.msra.mxu0 %v579
    %625 = vmatmul.bf16.gmra.mxu0 %v504
    %v626 = vpop.f32.mrf.mxu0
    %v627 = vadd.f32 %v613, %v626
    %v628 = vpop.f32.mrf.mxu0
    %v629 = vadd.f32 %v615, %v628
    %630 = vdwg.mxu0
    %v631 = vpack.c.bf16 %v627, %v627
    %v632 = vpack.c.bf16 %v629, %v629
    %v635 = vunpack.c.l.b16 %v209
    %v636 = vunpack.c.l.b16 %v210
    %v637 = vpack.c.b16 %v636, %v635
    %v641 = vunpack.c.l.b16 %v462
    %v642 = vunpack.c.l.b16 %v463
    %v643 = vpack.c.b16 %v642, %v641
    %v647 = vunpack.c.l.b16 %v631
    %v648 = vunpack.c.l.b16 %v632
    %v649 = vpack.c.b16 %v648, %v647
    %v651 = vld [vmem:[#allocation8] sm:$0xf]
    %v652 = vld [vmem:[#allocation8 + $0x4] sm:$0xf]
    %v653 = vld [vmem:[#allocation8 + $0x8] sm:$0xf]
    %v654 = vld [vmem:[#allocation8 + $0xc] sm:$0xf]
    %v655 = vld [vmem:[#allocation8 + $0x10] sm:$0xf]
    %v656 = vld [vmem:[#allocation8 + $0x14] sm:$0xf]
    %v657 = vld [vmem:[#allocation8 + $0x18] sm:$0xf]
    %v658 = vld [vmem:[#allocation8 + $0x1c] sm:$0xf]
    %v659 = vld [vmem:[#allocation8 + $0x20] sm:$0xf]
    %v660 = vld [vmem:[#allocation8 + $0x24] sm:$0xf]
    %v661 = vld [vmem:[#allocation8 + $0x28] sm:$0xf]
    %v662 = vld [vmem:[#allocation8 + $0x2c] sm:$0xf]
    %v663 = vld [vmem:[#allocation8 + $0x30] sm:$0xf]
    %v664 = vld [vmem:[#allocation8 + $0x34] sm:$0xf]
    %v665 = vld [vmem:[#allocation8 + $0x38] sm:$0xf]
    %v666 = vld [vmem:[#allocation8 + $0x3c] sm:$0xf]
    %v667 = vld [vmem:[#allocation8 + $0x40] sm:$0xf]
    %v668 = vld [vmem:[#allocation8 + $0x44] sm:$0xf]
    %v669 = vld [vmem:[#allocation8 + $0x48] sm:$0xf]
    %v670 = vld [vmem:[#allocation8 + $0x4c] sm:$0xf]
    %v671 = vld [vmem:[#allocation8 + $0x50] sm:$0xf]
    %v672 = vld [vmem:[#allocation8 + $0x54] sm:$0xf]
    %v673 = vld [vmem:[#allocation8 + $0x58] sm:$0xf]
    %v674 = vld [vmem:[#allocation8 + $0x5c] sm:$0xf]
    %v675 = vld [vmem:[#allocation8 + $0x60] sm:$0xf]
    %v676 = vld [vmem:[#allocation8 + $0x64] sm:$0xf]
    %v677 = vld [vmem:[#allocation8 + $0x68] sm:$0xf]
    %v678 = vld [vmem:[#allocation8 + $0x6c] sm:$0xf]
    %v679 = vld [vmem:[#allocation8 + $0x70] sm:$0xf]
    %v680 = vld [vmem:[#allocation8 + $0x74] sm:$0xf]
    %v681 = vld [vmem:[#allocation8 + $0x78] sm:$0xf]
    %v682 = vld [vmem:[#allocation8 + $0x7c] sm:$0xf]
    %v683 = vld [vmem:[#allocation8 + $0x80] sm:$0xf]
    %v684 = vld [vmem:[#allocation8 + $0x84] sm:$0xf]
    %v685 = vld [vmem:[#allocation8 + $0x88] sm:$0xf]
    %v686 = vld [vmem:[#allocation8 + $0x8c] sm:$0xf]
    %v687 = vld [vmem:[#allocation8 + $0x90] sm:$0xf]
    %v688 = vld [vmem:[#allocation8 + $0x94] sm:$0xf]
    %v689 = vld [vmem:[#allocation8 + $0x98] sm:$0xf]
    %v690 = vld [vmem:[#allocation8 + $0x9c] sm:$0xf]
    %v691 = vld [vmem:[#allocation8 + $0xa0] sm:$0xf]
    %v692 = vld [vmem:[#allocation8 + $0xa4] sm:$0xf]
    %v693 = vld [vmem:[#allocation8 + $0xa8] sm:$0xf]
    %v694 = vld [vmem:[#allocation8 + $0xac] sm:$0xf]
    %v695 = vld [vmem:[#allocation8 + $0xb0] sm:$0xf]
    %v696 = vld [vmem:[#allocation8 + $0xb4] sm:$0xf]
    %v697 = vld [vmem:[#allocation8 + $0xb8] sm:$0xf]
    %v698 = vld [vmem:[#allocation8 + $0xbc] sm:$0xf]
    %v699 = vperm.slane %v111, 0
    %v748 = vunpack.c.l.b16 %v651
    %v749 = vunpack.c.l.b16 %v652
    %v750 = vunpack.c.l.b16 %v653
    %v751 = vunpack.c.l.b16 %v654
    %v752 = vunpack.c.l.b16 %v655
    %v753 = vunpack.c.l.b16 %v656
    %v754 = vunpack.c.l.b16 %v657
    %v755 = vunpack.c.l.b16 %v658
    %v756 = vunpack.c.l.b16 %v659
    %v757 = vunpack.c.l.b16 %v660
    %v758 = vunpack.c.l.b16 %v661
    %v759 = vunpack.c.l.b16 %v662
    %v760 = vunpack.c.l.b16 %v663
    %v761 = vunpack.c.l.b16 %v664
    %v762 = vunpack.c.l.b16 %v665
    %v763 = vunpack.c.l.b16 %v666
    %v764 = vunpack.c.l.b16 %v667
    %v765 = vunpack.c.l.b16 %v668
    %v766 = vunpack.c.l.b16 %v669
    %v767 = vunpack.c.l.b16 %v670
    %v768 = vunpack.c.l.b16 %v671
    %v769 = vunpack.c.l.b16 %v672
    %v770 = vunpack.c.l.b16 %v673
    %v771 = vunpack.c.l.b16 %v674
    %v772 = vunpack.c.l.b16 %v675
    %v773 = vunpack.c.l.b16 %v676
    %v774 = vunpack.c.l.b16 %v677
    %v775 = vunpack.c.l.b16 %v678
    %v776 = vunpack.c.l.b16 %v679
    %v777 = vunpack.c.l.b16 %v680
    %v778 = vunpack.c.l.b16 %v681
    %v779 = vunpack.c.l.b16 %v682
    %v780 = vunpack.c.l.b16 %v683
    %v781 = vunpack.c.l.b16 %v684
    %v782 = vunpack.c.l.b16 %v685
    %v783 = vunpack.c.l.b16 %v686
    %v784 = vunpack.c.l.b16 %v687
    %v785 = vunpack.c.l.b16 %v688
    %v786 = vunpack.c.l.b16 %v689
    %v787 = vunpack.c.l.b16 %v690
    %v788 = vunpack.c.l.b16 %v691
    %v789 = vunpack.c.l.b16 %v692
    %v790 = vunpack.c.l.b16 %v693
    %v791 = vunpack.c.l.b16 %v694
    %v792 = vunpack.c.l.b16 %v695
    %v793 = vunpack.c.l.b16 %v696
    %v794 = vunpack.c.l.b16 %v697
    %v795 = vunpack.c.l.b16 %v698
    %v796 = vpack.c.b16 %v749, %v748
    %v797 = vpack.c.b16 %v751, %v750
    %v798 = vpack.c.b16 %v753, %v752
    %v799 = vpack.c.b16 %v755, %v754
    %v800 = vpack.c.b16 %v757, %v756
    %v801 = vpack.c.b16 %v759, %v758
    %v802 = vpack.c.b16 %v761, %v760
    %v803 = vpack.c.b16 %v763, %v762
    %v804 = vpack.c.b16 %v765, %v764
    %v805 = vpack.c.b16 %v767, %v766
    %v806 = vpack.c.b16 %v769, %v768
    %v807 = vpack.c.b16 %v771, %v770
    %v808 = vpack.c.b16 %v773, %v772
    %v809 = vpack.c.b16 %v775, %v774
    %v810 = vpack.c.b16 %v777, %v776
    %v811 = vpack.c.b16 %v779, %v778
    %v812 = vpack.c.b16 %v781, %v780
    %v813 = vpack.c.b16 %v783, %v782
    %v814 = vpack.c.b16 %v785, %v784
    %v815 = vpack.c.b16 %v787, %v786
    %v816 = vpack.c.b16 %v789, %v788
    %v817 = vpack.c.b16 %v791, %v790
    %v818 = vpack.c.b16 %v793, %v792
    %v819 = vpack.c.b16 %v795, %v794
    %844 = vmatpush.bf16.msra.mxu0 %v803
    %845 = vmatpush.bf16.msra.mxu0 %v802
    %846 = vmatpush.bf16.msra.mxu0 %v801
    %847 = vmatpush.bf16.msra.mxu0 %v800
    %848 = vmatpush.bf16.msra.mxu0 %v799
    %849 = vmatpush.bf16.msra.mxu0 %v798
    %850 = vmatpush.bf16.msra.mxu0 %v797
    %851 = vmatpush.bf16.msra.mxu0 %v796
    %852 = vmatmul.bf16.gmra.mxu0 %v637
    %v853 = vpop.f32.mrf.mxu0
    %v854 = vadd.f32 %v699, %v853
    %v855 = vpop.f32.mrf.mxu0
    %v856 = vadd.f32 %v699, %v855
    %857 = vdwg.mxu0
    %858 = vmatpush.bf16.msra.mxu0 %v811
    %859 = vmatpush.bf16.msra.mxu0 %v810
    %860 = vmatpush.bf16.msra.mxu0 %v809
    %861 = vmatpush.bf16.msra.mxu0 %v808
    %862 = vmatpush.bf16.msra.mxu0 %v807
    %863 = vmatpush.bf16.msra.mxu0 %v806
    %864 = vmatpush.bf16.msra.mxu0 %v805
    %865 = vmatpush.bf16.msra.mxu0 %v804
    %866 = vmatmul.bf16.gmra.mxu0 %v643
    %v867 = vpop.f32.mrf.mxu0
    %v868 = vadd.f32 %v854, %v867
    %v869 = vpop.f32.mrf.mxu0
    %v870 = vadd.f32 %v856, %v869
    %871 = vdwg.mxu0
    %872 = vmatpush.bf16.msra.mxu0 %v819
    %873 = vmatpush.bf16.msra.mxu0 %v818
    %874 = vmatpush.bf16.msra.mxu0 %v817
    %875 = vmatpush.bf16.msra.mxu0 %v816
    %876 = vmatpush.bf16.msra.mxu0 %v815
    %877 = vmatpush.bf16.msra.mxu0 %v814
    %878 = vmatpush.bf16.msra.mxu0 %v813
    %879 = vmatpush.bf16.msra.mxu0 %v812
    %880 = vmatmul.bf16.gmra.mxu0 %v649
    %v881 = vpop.f32.mrf.mxu0
    %v882 = vadd.f32 %v868, %v881
    %v883 = vpop.f32.mrf.mxu0
    %v884 = vadd.f32 %v870, %v883
    %885 = vdwg.mxu0
    %v886 = vmax.f32 %v882, 0.0
    %v887 = vmax.f32 %v884, 0.0
    %v888 = vpack.c.bf16 %v887, %v886
    %v889 = vld [vmem:[%s5] sm:$0xf]
    %v890 = vld [vmem:[%s5 + $0x4] sm:$0xf]
    %v891 = vld [vmem:[%s5 + $0x8] sm:$0xf]
    %v892 = vld [vmem:[%s5 + $0xc] sm:$0xf]
    %v893 = vld [vmem:[%s5 + $0x10] sm:$0xf]
    %v894 = vld [vmem:[%s5 + $0x14] sm:$0xf]
    %v895 = vld [vmem:[%s5 + $0x18] sm:$0xf]
    %v896 = vld [vmem:[%s5 + $0x1c] sm:$0xf]
    %v897 = vld [vmem:[%s5 + $0x20] sm:$0xf]
    %v898 = vld [vmem:[%s5 + $0x24] sm:$0xf]
    %v899 = vld [vmem:[%s5 + $0x28] sm:$0xf]
    %v900 = vld [vmem:[%s5 + $0x2c] sm:$0xf]
    %v901 = vld [vmem:[%s5 + $0x30] sm:$0xf]
    %v902 = vld [vmem:[%s5 + $0x34] sm:$0xf]
    %v903 = vld [vmem:[%s5 + $0x38] sm:$0xf]
    %v904 = vld [vmem:[%s5 + $0x3c] sm:$0xf]
    %v905 = vperm.slane %v115, 0
    %v922 = vunpack.c.l.b16 %v889
    %v923 = vunpack.c.l.b16 %v890
    %v924 = vunpack.c.l.b16 %v891
    %v925 = vunpack.c.l.b16 %v892
    %v926 = vunpack.c.l.b16 %v893
    %v927 = vunpack.c.l.b16 %v894
    %v928 = vunpack.c.l.b16 %v895
    %v929 = vunpack.c.l.b16 %v896
    %v930 = vunpack.c.l.b16 %v897
    %v931 = vunpack.c.l.b16 %v898
    %v932 = vunpack.c.l.b16 %v899
    %v933 = vunpack.c.l.b16 %v900
    %v934 = vunpack.c.l.b16 %v901
    %v935 = vunpack.c.l.b16 %v902
    %v936 = vunpack.c.l.b16 %v903
    %v937 = vunpack.c.l.b16 %v904
    %v938 = vpack.c.b16 %v923, %v922
    %v939 = vpack.c.b16 %v925, %v924
    %v940 = vpack.c.b16 %v927, %v926
    %v941 = vpack.c.b16 %v929, %v928
    %v942 = vpack.c.b16 %v931, %v930
    %v943 = vpack.c.b16 %v933, %v932
    %v944 = vpack.c.b16 %v935, %v934
    %v945 = vpack.c.b16 %v937, %v936
    %954 = vmatpush.bf16.msra.mxu0 %v945
    %955 = vmatpush.bf16.msra.mxu0 %v944
    %956 = vmatpush.bf16.msra.mxu0 %v943
    %957 = vmatpush.bf16.msra.mxu0 %v942
    %958 = vmatpush.bf16.msra.mxu0 %v941
    %959 = vmatpush.bf16.msra.mxu0 %v940
    %960 = vmatpush.bf16.msra.mxu0 %v939
    %961 = vmatpush.bf16.msra.mxu0 %v938
    %962 = vmatmul.bf16.gmra.mxu0 %v888
    %v963 = vpop.f32.mrf.mxu0
    %v964 = vadd.f32 %v905, %v963
    %v965 = vpop.f32.mrf.mxu0
    %v966 = vadd.f32 %v905, %v965
    %967 = vdwg.mxu0
    %970 = vrot.lane.b32.xlu0 %v964, 127
    %v971 = vpop.permute.xlu0 %970
    %972 = vrot.lane.b32.xlu0 %v966, 127
    %v973 = vpop.permute.xlu0 %972
    %v976 = vmax.f32 %v964, %v971
    %v977 = vmax.f32 %v966, %v973
    %978 = vrot.lane.b32.xlu0 %v964, 126
    %v979 = vpop.permute.xlu0 %978
    %980 = vrot.lane.b32.xlu0 %v966, 126
    %v981 = vpop.permute.xlu0 %980
    %v984 = vmax.f32 %v976, %v979
    %v985 = vmax.f32 %v977, %v981
    %v986 = vsub.f32 %v964, %v984
    %v987 = vsub.f32 %v966, %v985
    %v988 = vmul.f32 %v986, 1.442695
    %v989 = vpow.pop %v988
    %v990 = vmul.f32 %v987, 1.442695
    %v991 = vpow.pop %v990
    %994 = vrot.lane.b32.xlu0 %v984, 1
    %v995 = vpop.permute.xlu0 %994
    %996 = vrot.lane.b32.xlu0 %v985, 1
    %v997 = vpop.permute.xlu0 %996
    %v1000 = vsub.f32 %v964, %v995
    %v1001 = vsub.f32 %v966, %v997
    %v1002 = vmul.f32 %v1000, 1.442695
    %v1003 = vpow.pop %v1002
    %v1004 = vmul.f32 %v1001, 1.442695
    %v1005 = vpow.pop %v1004
    %1006 = vrot.lane.b32.xlu0 %v984, 2
    %v1007 = vpop.permute.xlu0 %1006
    %1008 = vrot.lane.b32.xlu0 %v985, 2
    %v1009 = vpop.permute.xlu0 %1008
    %v1012 = vsub.f32 %v964, %v1007
    %v1013 = vsub.f32 %v966, %v1009
    %v1014 = vmul.f32 %v1012, 1.442695
    %v1015 = vpow.pop %v1014
    %v1016 = vmul.f32 %v1013, 1.442695
    %v1017 = vpow.pop %v1016
    %1020 = vrot.lane.b32.xlu0 %v1003, 127
    %v1021 = vpop.permute.xlu0 %1020
    %1022 = vrot.lane.b32.xlu0 %v1005, 127
    %v1023 = vpop.permute.xlu0 %1022
    %v1026 = vadd.f32 %v989, %v1021
    %v1027 = vadd.f32 %v991, %v1023
    %1030 = vrot.lane.b32.xlu0 %v1015, 126
    %v1031 = vpop.permute.xlu0 %1030
    %1032 = vrot.lane.b32.xlu0 %v1017, 126
    %v1033 = vpop.permute.xlu0 %1032
    %v1036 = vadd.f32 %v1026, %v1031
    %v1037 = vadd.f32 %v1027, %v1033
    %v1038 = vrcp.pop %v1036
    %v1039 = vrcp.pop %v1037
    %v1040 = vmul.f32 %v989, %v1038
    %v1041 = vmul.f32 %v991, %v1039
    %v1042 = vunpack.c.l.bf16 %v209
    %v1043 = vunpack.c.l.bf16 %v210
    %1045 = vset.pattern.permute.xlu0 0
    %1046 = vperm.xlu0 %1045, %v1040
    %v1047 = vpop.permute.xlu0 %1046
    %1050 = vset.pattern.permute.xlu0 0
    %1051 = vperm.xlu0 %1050, %v1041
    %v1052 = vpop.permute.xlu0 %1051
    %v1054 = vmul.f32 %v1047, %v1042
    %v1055 = vmul.f32 %v1052, %v1043
    %1058 = vrot.lane.b32.xlu0 %v1038, 1
    %v1059 = vpop.permute.xlu0 %1058
    %1060 = vrot.lane.b32.xlu0 %v1039, 1
    %v1061 = vpop.permute.xlu0 %1060
    %v1064 = vmul.f32 %v1003, %v1059
    %v1065 = vmul.f32 %v1005, %v1061
    %v1066 = vunpack.c.l.bf16 %v462
    %v1067 = vunpack.c.l.bf16 %v463
    %1069 = vset.pattern.permute.xlu0 1
    %1070 = vperm.xlu0 %1069, %v1064
    %v1071 = vpop.permute.xlu0 %1070
    %1074 = vset.pattern.permute.xlu0 1
    %1075 = vperm.xlu0 %1074, %v1065
    %v1076 = vpop.permute.xlu0 %1075
    %v1078 = vmul.f32 %v1071, %v1066
    %v1079 = vmul.f32 %v1076, %v1067
    %v1080 = vadd.f32 %v1054, %v1078
    %v1081 = vadd.f32 %v1055, %v1079
    %1082 = vrot.lane.b32.xlu0 %v1038, 2
    %v1083 = vpop.permute.xlu0 %1082
    %1084 = vrot.lane.b32.xlu0 %v1039, 2
    %v1085 = vpop.permute.xlu0 %1084
    %v1088 = vmul.f32 %v1015, %v1083
    %v1089 = vmul.f32 %v1017, %v1085
    %v1090 = vunpack.c.l.bf16 %v631
    %v1091 = vunpack.c.l.bf16 %v632
    %1093 = vset.pattern.permute.xlu0 2
    %1094 = vperm.xlu0 %1093, %v1088
    %v1095 = vpop.permute.xlu0 %1094
    %1098 = vset.pattern.permute.xlu0 2
    %1099 = vperm.xlu0 %1098, %v1089
    %v1100 = vpop.permute.xlu0 %1099
    %v1102 = vmul.f32 %v1095, %v1090
    %v1103 = vmul.f32 %v1100, %v1091
    %v1104 = vadd.f32 %v1080, %v1102
    %v1105 = vadd.f32 %v1081, %v1103
    %v1106 = vpack.c.bf16 %v1105, %v1104
    %v1107 = vld [vmem:[#allocation10] sm:$0xf]
    %v1108 = vld [vmem:[#allocation10 + $0x4] sm:$0xf]
    %v1109 = vld [vmem:[#allocation10 + $0x8] sm:$0xf]
    %v1110 = vld [vmem:[#allocation10 + $0xc] sm:$0xf]
    %v1111 = vld [vmem:[#allocation10 + $0x10] sm:$0xf]
    %v1112 = vld [vmem:[#allocation10 + $0x14] sm:$0xf]
    %v1113 = vld [vmem:[#allocation10 + $0x18] sm:$0xf]
    %v1114 = vld [vmem:[#allocation10 + $0x1c] sm:$0xf]
    %v1115 = vld [vmem:[#allocation10 + $0x20] sm:$0xf]
    %v1116 = vld [vmem:[#allocation10 + $0x24] sm:$0xf]
    %v1117 = vld [vmem:[#allocation10 + $0x28] sm:$0xf]
    %v1118 = vld [vmem:[#allocation10 + $0x2c] sm:$0xf]
    %v1119 = vld [vmem:[#allocation10 + $0x30] sm:$0xf]
    %v1120 = vld [vmem:[#allocation10 + $0x34] sm:$0xf]
    %v1121 = vld [vmem:[#allocation10 + $0x38] sm:$0xf]
    %v1122 = vld [vmem:[#allocation10 + $0x3c] sm:$0xf]
    %v1123 = vperm.slane %v112, 0
    %v1140 = vunpack.c.l.b16 %v1107
    %v1141 = vunpack.c.l.b16 %v1108
    %v1142 = vunpack.c.l.b16 %v1109
    %v1143 = vunpack.c.l.b16 %v1110
    %v1144 = vunpack.c.l.b16 %v1111
    %v1145 = vunpack.c.l.b16 %v1112
    %v1146 = vunpack.c.l.b16 %v1113
    %v1147 = vunpack.c.l.b16 %v1114
    %v1148 = vunpack.c.l.b16 %v1115
    %v1149 = vunpack.c.l.b16 %v1116
    %v1150 = vunpack.c.l.b16 %v1117
    %v1151 = vunpack.c.l.b16 %v1118
    %v1152 = vunpack.c.l.b16 %v1119
    %v1153 = vunpack.c.l.b16 %v1120
    %v1154 = vunpack.c.l.b16 %v1121
    %v1155 = vunpack.c.l.b16 %v1122
    %v1156 = vpack.c.b16 %v1141, %v1140
    %v1157 = vpack.c.b16 %v1143, %v1142
    %v1158 = vpack.c.b16 %v1145, %v1144
    %v1159 = vpack.c.b16 %v1147, %v1146
    %v1160 = vpack.c.b16 %v1149, %v1148
    %v1161 = vpack.c.b16 %v1151, %v1150
    %v1162 = vpack.c.b16 %v1153, %v1152
    %v1163 = vpack.c.b16 %v1155, %v1154
    %1172 = vmatpush.bf16.msra.mxu0 %v1163
    %1173 = vmatpush.bf16.msra.mxu0 %v1162
    %1174 = vmatpush.bf16.msra.mxu0 %v1161
    %1175 = vmatpush.bf16.msra.mxu0 %v1160
    %1176 = vmatpush.bf16.msra.mxu0 %v1159
    %1177 = vmatpush.bf16.msra.mxu0 %v1158
    %1178 = vmatpush.bf16.msra.mxu0 %v1157
    %1179 = vmatpush.bf16.msra.mxu0 %v1156
    %1180 = vmatmul.bf16.gmra.mxu0 %v1106
    %v1181 = vpop.f32.mrf.mxu0
    %v1182 = vadd.f32 %v1123, %v1181
    %v1183 = vpop.f32.mrf.mxu0
    %v1184 = vadd.f32 %v1123, %v1183
    %1185 = vdwg.mxu0
    %1186 = vadd.xlane.f32.xlu0 %v1182
    %v1187 = vpop.xlane.xlu0 %1186
    %1188 = vadd.xlane.f32.xlu0 %v1184
    %v1189 = vpop.xlane.xlu0 %1188
    %v1190 = vrcp.pop 128.0
    %v1191 = vmul.f32 128.0, %v1190
    %v1192 = vsub.f32 1.0, %v1191
    %v1193 = vmul.f32 %v1190, %v1192
    %v1194 = vadd.f32 %v1190, %v1193
    %vm1195 = vweird.f32 %v1190
    %v1196 = vsel %vm1195, %v1190, %v1194
    %v1197 = vmul.f32 %v1187, %v1196
    %v1198 = vmul.f32 %v1189, %v1196
    %v1199 = vsub.f32 %v1182, %v1197
    %v1200 = vsub.f32 %v1184, %v1198
    %v1201 = vmul.f32 %v1199, %v1199
    %v1202 = vmul.f32 %v1200, %v1200
    %1203 = vadd.xlane.f32.xlu0 %v1201
    %v1204 = vpop.xlane.xlu0 %1203
    %1205 = vadd.xlane.f32.xlu0 %v1202
    %v1206 = vpop.xlane.xlu0 %1205
    %v1207 = vmul.f32 %v1204, %v1196
    %v1208 = vmul.f32 %v1206, %v1196
    %v1209 = vadd.f32 %v1207, 1e-05
    %v1210 = vadd.f32 %v1208, 1e-05
    %v1211 = vrsqrt.pop %v1209
    %v1212 = vmul.f32 %v1211, %v1209
    %v1213 = vmul.f32 %v1212, %v1211
    %v1214 = vmul.f32 0.5, %v1213
    %v1215 = vsub.f32 1.5, %v1214
    %v1216 = vmul.f32 %v1211, %v1215
    %vm1217 = vweird.f32 %v1209
    %vm1218 = vweird.f32 %v1211
    %vm1219 = vmor %vm1217, %vm1218
    %v1220 = vsel %vm1219, %v1211, %v1216
    %v1221 = vrsqrt.pop %v1210
    %v1222 = vmul.f32 %v1221, %v1210
    %v1223 = vmul.f32 %v1222, %v1221
    %v1224 = vmul.f32 0.5, %v1223
    %v1225 = vsub.f32 1.5, %v1224
    %v1226 = vmul.f32 %v1221, %v1225
    %vm1227 = vweird.f32 %v1210
    %vm1228 = vweird.f32 %v1221
    %vm1229 = vmor %vm1227, %vm1228
    %v1230 = vsel %vm1229, %v1221, %v1226
    %v1231 = vmul.f32 %v1199, %v1220
    %v1232 = vmul.f32 %v1200, %v1230
    %v1233 = vperm.slane %v113, 0
    %v1234 = vmul.f32 %v1231, %v1233
    %v1235 = vmul.f32 %v1232, %v1233
    %v1236 = vperm.slane %v114, 0
    %v1237 = vadd.f32 %v1234, %v1236
    %v1238 = vadd.f32 %v1235, %v1236
    %v1239 = vmax.f32 %v1237, 0.0
    %v1240 = vmax.f32 %v1238, 0.0
    %1241 = vst [vmem:[#allocation11] sm:$0xff] %v1239
    %1242 = vst [vmem:[#allocation11 + $0x8] sm:$0xff] %v1240
    // Predicated region
    $region54: #{tpu_custom_call.1} parent=1 // pred_check
      _
    $region55: #{tpu_custom_call.1} parent=1 // pred_check_branch
      %1244 = sbr.rel (0) target = $region57
    $region56: #{tpu_custom_call.1} parent=1 // pred_region
      %1246 = vsyncadd [#allocation4], 0
      %s1247 = sshll.u32 [#allocation11], 4
      %s1248 = int_to_ptr.vmem [resolvable:$true] %s1247
      %s1249 = sshll.u32 %s8, 4
      %s1250 = int_to_ptr.hbm [resolvable:$true] %s1249
      %1255 = dma.vmem_to_hbm [thread:$0]  %s1248, 256, %s1250, [#allocation4], 128, 128, 8
    $region57: #{tpu_custom_call.1} parent=1 // pred_fallthru
      _
    // Predicated region
    $region58: #{tpu_custom_call.1} parent=1 // pred_check
      _
    $region59: #{tpu_custom_call.1} parent=1 // pred_check_branch
      %1257 = sbr.rel (0) target = $region61
    $region60: #{tpu_custom_call.1} parent=1 // pred_region
      %1259 = dma.done [#allocation4], 256
    $region61: #{tpu_custom_call.1} parent=1 // pred_fallthru
      _
    %1260 = vsyncpa [#allocation3], 1
    %1261 = vsyncpa [#allocation6], 1
    %1262 = vsyncpa [#allocation9], 1
    %1263 = vsyncpa [#allocation4], 1

</llo_original>
